<compile_context>
chip_gen: v7x
topology: tpu7x:2x2x1
jax: 0.10.0
libtpu: 0.0.40
codegen_flags: <defaults>
</compile_context>

<pallas_src>
import jax
import jax.numpy as jnp
from jax.experimental import pallas as pl
from jax.experimental.pallas import tpu as pltpu


def _route_dma_kernel(x2_ref, x1_ref, o_ref, sem):
    """Pure-DMA concat: x2 fills out[:, :C2], x1 fills out[:, C2:]."""
    c2 = x2_ref.shape[1]
    c1 = x1_ref.shape[1]

    cp2 = pltpu.make_async_copy(x2_ref, o_ref.at[:, pl.ds(0, c2)], sem.at[0])
    cp1 = pltpu.make_async_copy(x1_ref, o_ref.at[:, pl.ds(c2, c1)], sem.at[1])

    # Start both before waiting so the two HBM->HBM transfers overlap.
    cp2.start()
    cp1.start()
    cp2.wait()
    cp1.wait()


def route_concat(x1, x2):
    """Pallas equivalent of Route.forward(x1, x2) == torch.cat((x2, x1), dim=1)."""
    assert x1.ndim == 4 and x2.ndim == 4, "expected NCHW inputs"
    b, c1, h, w = x1.shape
    b2, c2, h2, w2 = x2.shape
    assert (b, h, w) == (b2, h2, w2), "batch/spatial dims must match for channel concat"
    assert x1.dtype == x2.dtype
    dtype = x1.dtype
    n = h * w
    itemsize = jnp.dtype(dtype).itemsize
    total_bytes = (x1.size + x2.size) * itemsize  # read once + write once

    out = pl.pallas_call(
        _route_dma_kernel,
        out_shape=jax.ShapeDtypeStruct((b, c1 + c2, n), dtype),
        in_specs=[
            pl.BlockSpec(memory_space=pl.ANY),   # x2 stays in HBM
            pl.BlockSpec(memory_space=pl.ANY),   # x1 stays in HBM
        ],
        out_specs=pl.BlockSpec(memory_space=pl.ANY),
        scratch_shapes=[pltpu.SemaphoreType.DMA((2,))],
        cost_estimate=pl.CostEstimate(
            flops=0, transcendentals=0, bytes_accessed=2 * total_bytes),
    )(x2.reshape(b, c2, n), x1.reshape(b, c1, n))

    return out.reshape(b, c1 + c2, h, w)


class Route:
    """JAX/Pallas port of the PyTorch Route module (channel concat, x2 first)."""

    def __call__(self, x1, x2):
        return route_concat(x1, x2)


if __name__ == "__main__":
    key = jax.random.PRNGKey(0)
    k1, k2, k3, k4 = jax.random.split(key, 4)

    route = Route()

    # Typical Route usage in YOLOv3: unequal channel counts, same spatial size.
    b, c1, c2, hw = 2, 16, 32, 16
    x1 = jax.random.normal(k1, (b, c1, hw, hw), jnp.float32)
    x2 = jax.random.normal(k2, (b, c2, hw, hw), jnp.float32)
    out = jax.block_until_ready(route(x1, x2))
    ref = jnp.concatenate([x2, x1], axis=1)
    assert out.shape == (b, c1 + c2, hw, hw)
    assert jnp.array_equal(out, ref)

    # Odd channel counts: no (8,128)/sublane constraints in the pure-DMA design.
    y1 = jax.random.normal(k3, (b, 3, hw, hw), jnp.float32)
    y2 = jax.random.normal(k4, (b, 6, hw, hw), jnp.float32)
    out2 = jax.block_until_ready(route(y1, y2))
    assert jnp.array_equal(out2, jnp.concatenate([y2, y1], axis=1))

    # bf16: dtype-agnostic (no vreg path, no packing rules).
    z1 = x1.astype(jnp.bfloat16)
    z2 = x2.astype(jnp.bfloat16)
    out3 = jax.block_until_ready(route(z1, z2))
    assert jnp.array_equal(out3, jnp.concatenate([z2, z1], axis=1))

    print("KERNEL_OK")
</pallas_src>

<mosaic_0001>
module attributes {stable_mosaic.version = 11 : i64} {
  func.func @_route_dma_kernel(%arg0: memref<2x32x256xf32, #tpu.memory_space<any>>, %arg1: memref<2x16x256xf32, #tpu.memory_space<any>>, %arg2: memref<2x48x256xf32, #tpu.memory_space<any>>, %arg3: memref<2x!tpu.dma_semaphore, #tpu.memory_space<semaphore_mem>>) attributes {dimension_semantics = [], scalar_prefetch = 0 : i64, scratch_operands = 1 : i64, tpu.core_type = #tpu.core_type<tc>} {
    %c0_i32 = arith.constant 0 : i32
    %c0_i32_0 = arith.constant 0 : i32
    %c0_i32_1 = arith.constant 0 : i32
    %c0_i32_2 = arith.constant 0 : i32
    %0 = tpu.memref_slice %arg2[%c0_i32_0, %c0_i32_1, %c0_i32_2] : memref<2x48x256xf32, #tpu.memory_space<any>> -> memref<2x32x256xf32, #tpu.memory_space<any>>
    %1 = tpu.memref_slice %arg3[%c0_i32] : memref<2x!tpu.dma_semaphore, #tpu.memory_space<semaphore_mem>> -> memref<1x!tpu.dma_semaphore, #tpu.memory_space<semaphore_mem>>
    %2 = tpu.memref_squeeze %1 : memref<1x!tpu.dma_semaphore, #tpu.memory_space<semaphore_mem>> -> memref<!tpu.dma_semaphore, #tpu.memory_space<semaphore_mem>>
    tpu.enqueue_dma source(%arg0 : memref<2x32x256xf32, #tpu.memory_space<any>>) target(%0 : memref<2x32x256xf32, #tpu.memory_space<any>>) target_semaphore(%2 : memref<!tpu.dma_semaphore, #tpu.memory_space<semaphore_mem>>)
    %c1_i32 = arith.constant 1 : i32
    %c0_i32_3 = arith.constant 0 : i32
    %c32_i32 = arith.constant 32 : i32
    %c0_i32_4 = arith.constant 0 : i32
    %3 = tpu.memref_slice %arg2[%c0_i32_3, %c32_i32, %c0_i32_4] : memref<2x48x256xf32, #tpu.memory_space<any>> -> memref<2x16x256xf32, #tpu.memory_space<any>>
    %4 = tpu.memref_slice %arg3[%c1_i32] : memref<2x!tpu.dma_semaphore, #tpu.memory_space<semaphore_mem>> -> memref<1x!tpu.dma_semaphore, #tpu.memory_space<semaphore_mem>>
    %5 = tpu.memref_squeeze %4 : memref<1x!tpu.dma_semaphore, #tpu.memory_space<semaphore_mem>> -> memref<!tpu.dma_semaphore, #tpu.memory_space<semaphore_mem>>
    tpu.enqueue_dma source(%arg1 : memref<2x16x256xf32, #tpu.memory_space<any>>) target(%3 : memref<2x16x256xf32, #tpu.memory_space<any>>) target_semaphore(%5 : memref<!tpu.dma_semaphore, #tpu.memory_space<semaphore_mem>>)
    %c0_i32_5 = arith.constant 0 : i32
    %c0_i32_6 = arith.constant 0 : i32
    %c0_i32_7 = arith.constant 0 : i32
    %c0_i32_8 = arith.constant 0 : i32
    %6 = tpu.memref_slice %arg2[%c0_i32_6, %c0_i32_7, %c0_i32_8] : memref<2x48x256xf32, #tpu.memory_space<any>> -> memref<2x32x256xf32, #tpu.memory_space<any>>
    %7 = tpu.memref_slice %arg3[%c0_i32_5] : memref<2x!tpu.dma_semaphore, #tpu.memory_space<semaphore_mem>> -> memref<1x!tpu.dma_semaphore, #tpu.memory_space<semaphore_mem>>
    %8 = tpu.memref_squeeze %7 : memref<1x!tpu.dma_semaphore, #tpu.memory_space<semaphore_mem>> -> memref<!tpu.dma_semaphore, #tpu.memory_space<semaphore_mem>>
    tpu.wait_dma2 semaphore(%8 : memref<!tpu.dma_semaphore, #tpu.memory_space<semaphore_mem>>) src(%arg0 : memref<2x32x256xf32, #tpu.memory_space<any>>) dst(%6 : memref<2x32x256xf32, #tpu.memory_space<any>>)
    %c1_i32_9 = arith.constant 1 : i32
    %c0_i32_10 = arith.constant 0 : i32
    %c32_i32_11 = arith.constant 32 : i32
    %c0_i32_12 = arith.constant 0 : i32
    %9 = tpu.memref_slice %arg2[%c0_i32_10, %c32_i32_11, %c0_i32_12] : memref<2x48x256xf32, #tpu.memory_space<any>> -> memref<2x16x256xf32, #tpu.memory_space<any>>
    %10 = tpu.memref_slice %arg3[%c1_i32_9] : memref<2x!tpu.dma_semaphore, #tpu.memory_space<semaphore_mem>> -> memref<1x!tpu.dma_semaphore, #tpu.memory_space<semaphore_mem>>
    %11 = tpu.memref_squeeze %10 : memref<1x!tpu.dma_semaphore, #tpu.memory_space<semaphore_mem>> -> memref<!tpu.dma_semaphore, #tpu.memory_space<semaphore_mem>>
    tpu.wait_dma2 semaphore(%11 : memref<!tpu.dma_semaphore, #tpu.memory_space<semaphore_mem>>) src(%arg1 : memref<2x16x256xf32, #tpu.memory_space<any>>) dst(%9 : memref<2x16x256xf32, #tpu.memory_space<any>>)
    return
  }
}

</mosaic_0001>

<llo_original>
// kernel: tpu_custom_call.1
$region0: #{tpu_custom_call.1}
  #allocation0 [shape = 'u32[]', space=smem, size = 0x4, offset = 0x4, fixed_abs, tag = 'smem constant byte address 0x4 - core index']
  #allocation1 [shape = 'u32[144,128]{1,0:T(1,128)}', space=vmem, size = 0x12000, scoped, tag = 'internal scratch']
  #allocation2 [shape = 's32[2]{0}', space=sflag, size = 0x8, scoped, tag = 'scratch operand']
  #allocation3 [shape = 's32[]', space=sflag, size = 0x4, offset = 0, fixed_abs, tag = 'sflag constant byte address 0x0 - dummy sync flag']
  #allocation5 [shape = 's32[]', space=sflag, size = 0x4, offset = 0, fixed_abs, tag = 'sflag constant byte address 0x0 - dummy sync flag']
  %s0 = inlined_call_operand.hbm [shape: f32[2,32,256], index: 0, kind: input, shape index: {}]
  %s1 = inlined_call_operand.hbm [shape: f32[2,16,256], index: 1, kind: input, shape index: {}]
  %s2 = inlined_call_operand.hbm [shape: f32[2,48,256], index: 2, kind: output, shape index: {}]
  %s3 = sld [smem:[#allocation0]]
  $region2: #{tpu_custom_call.1} parent=0
    _
  %s5 = ssub.s32 1, %s3
  %s6 = scalar_select 0, %s5, %s3
  $region1: #{tpu_custom_call.1} parent=0
    #allocation4 [shape = 'u32[3]{0}', space=smem, size = 0xc, scoped, tag = 'DMA stride descriptor']
    #allocation6 [shape = 'u32[3]{0}', space=smem, size = 0xc, scoped, tag = 'DMA stride descriptor']
    %s8 = sshll.u32 1, 14
    %s9 = sxor.u32 4294967295, %s8
    %s12 = sshll.u32 3, 24
    %s13 = sxor.u32 4294967295, %s12
    %s14 = sand.u32 0, %s13
    %s16 = sor.u32 %s14, 0
    %19 = sst [smem:[#allocation4]] 1024
    %s20 = scalar_lea.smem [#allocation4], 1
    %21 = sst [smem:[%s20]] 1536
    %s22 = scalar_lea.smem [#allocation4], 2
    %23 = sst [smem:[%s22]] 64
    %25 = dma.general %s0, 2048, %s2, [#allocation2], [#allocation3], [#allocation4], %s16, 0
    %s26 = scalar_lea.hbm %s2, 1024
    %s27 = scalar_lea.sflag [#allocation2], 1
    %s29 = sshll.u32 1, 14
    %s30 = sxor.u32 4294967295, %s29
    %s33 = sshll.u32 3, 24
    %s34 = sxor.u32 4294967295, %s33
    %s35 = sand.u32 0, %s34
    %s37 = sor.u32 %s35, 0
    %40 = sst [smem:[#allocation6]] 512
    %s41 = scalar_lea.smem [#allocation6], 1
    %42 = sst [smem:[%s41]] 1536
    %s43 = scalar_lea.smem [#allocation6], 2
    %44 = sst [smem:[%s43]] 32
    %46 = dma.general %s1, 1024, %s26, %s27, [#allocation5], [#allocation6], %s37, 0
    %s47 = smul.u32 8, 2
    %s48 = smul.u32 %s47, 4
    %s49 = smul.u32 %s48, 2
    %s50 = sshll.u32 %s49, 4
    %51 = dma.done [#allocation2], %s50
    %s52 = smul.u32 %s47, 2
    %s53 = smul.u32 %s52, 2
    %s54 = sshll.u32 %s53, 4
    %55 = dma.done %s27, %s54
  %56 = vsyncmov [#allocation2]
  %s57 = vpop.sfrf %56
  %p58 = scmp.eq.s32.totalorder %s57, 0
  %p59 = pneg %p58
  %61 = shalt.err (%p59)
  %s62 = scalar_lea.sflag [#allocation2], 1
  %63 = vsyncmov %s62
  %s64 = vpop.sfrf %63
  %p65 = scmp.eq.s32.totalorder %s64, 0
  %p66 = pneg %p65
  %68 = shalt.err (%p66)

</llo_original>
